<compile_context>
chip_gen: v6e
topology: v6e:2x2x1
jax: 0.10.0
libtpu: 0.0.40
codegen_flags: <defaults>
</compile_context>

<pallas_src>
import functools

import jax
import jax.numpy as jnp
from jax.experimental import pallas as pl
from jax.experimental.pallas import tpu as pltpu


_VMEM_LIMIT = 48 * 1024 * 1024  # headroom under v7x's 64 MiB physical VMEM


def _cp(*semantics):
    return pltpu.CompilerParams(
        dimension_semantics=semantics, vmem_limit_bytes=_VMEM_LIMIT
    )


def _pick_tile(dim, target, multiple):
    """Largest divisor of `dim` <= target that is a multiple of `multiple`.
    Falls back to the full dim (full-extent blocks are always legal).
    TODO(synk): pad-to-tile + in-kernel masking for shapes with no aligned divisor
                (bounds tile size on v7x's smaller 64 MiB VMEM)."""
    if dim <= target:
        return dim
    t = (target // multiple) * multiple
    while t >= multiple:
        if dim % t == 0:
            return t
        t -= multiple
    return dim


def _tanh_gelu(x):
    c = 0.7978845608028654  # sqrt(2/pi)
    return 0.5 * x * (1.0 + jnp.tanh(c * (x + 0.044715 * x * x * x)))


def _layer_norm_rows(x32, g32, b32, eps):
    mu = jnp.mean(x32, axis=-1, keepdims=True)
    xc = x32 - mu
    var = jnp.mean(xc * xc, axis=-1, keepdims=True)
    return xc * jax.lax.rsqrt(var + eps) * g32 + b32


# --------------------------------------------------------------------------
# Fused linear:  [pre-LN] -> x @ W (bf16 MXU, f32 acc) -> [+bias] -> [GELU]
#                -> [+ residual * drop_path_scale] -> [post-LN]
# Full-K blocks (no k grid axis, no accumulator scratch needed).
# --------------------------------------------------------------------------
def _fused_linear_kernel(*refs, pre_ln, has_bias, activation, has_residual,
                         has_scale, post_ln, eps):
    it = iter(refs)
    x_ref = next(it)
    if pre_ln:
        g0_ref = next(it)
        b0_ref = next(it)
    w_ref = next(it)
    if has_bias:
        bias_ref = next(it)
    if has_residual:
        res_ref = next(it)
        if has_scale:
            scale_ref = next(it)
    if post_ln:
        g1_ref = next(it)
        b1_ref = next(it)
    o_ref = next(it)

    if pre_ln:
        x32 = x_ref[...].astype(jnp.float32)                 # (tm, K)
        x32 = _layer_norm_rows(x32, g0_ref[...].astype(jnp.float32),
                               b0_ref[...].astype(jnp.float32), eps)
        x_mm = x32.astype(jnp.bfloat16)
    else:
        x_mm = x_ref[...].astype(jnp.bfloat16)

    y = jnp.dot(x_mm, w_ref[...].astype(jnp.bfloat16),       # bf16 MXU pass
                preferred_element_type=jnp.float32)           # (tm, tn) f32 acc

    if has_bias:
        y = y + bias_ref[...].astype(jnp.float32)
    if activation == "gelu":
        y = _tanh_gelu(y)
    if has_residual:
        branch = y
        if has_scale:
            branch = branch * scale_ref[...]                  # per-row DropPath scale
        y = res_ref[...].astype(jnp.float32) + branch
    if post_ln:
        y = _layer_norm_rows(y, g1_ref[...].astype(jnp.float32),
                             b1_ref[...].astype(jnp.float32), eps)
    o_ref[...] = y.astype(o_ref.dtype)


def fused_linear(x, w, *, bias=None, pre_ln=None, activation=None,
                 residual=None, scale=None, post_ln=None, eps=1e-5,
                 out_dtype=None, tm_target=512, tn_target=512):
    M, K = x.shape
    Kw, Nout = w.shape
    assert K == Kw
    out_dtype = x.dtype if out_dtype is None else out_dtype

    tm = _pick_tile(M, tm_target, 16)                         # 16: bf16 sublane packing
    tn = Nout if post_ln is not None else _pick_tile(Nout, tn_target, 128)
    grid = (M // tm, Nout // tn)

    in_specs = [pl.BlockSpec((tm, K), lambda i, j: (i, 0))]
    args = [x]
    if pre_ln is not None:
        in_specs += [pl.BlockSpec((1, K), lambda i, j: (0, 0)),
                     pl.BlockSpec((1, K), lambda i, j: (0, 0))]
        args += [pre_ln[0], pre_ln[1]]
    in_specs.append(pl.BlockSpec((K, tn), lambda i, j: (0, j)))
    args.append(w)
    if bias is not None:
        in_specs.append(pl.BlockSpec((1, tn), lambda i, j: (0, j)))
        args.append(bias)
    if residual is not None:
        in_specs.append(pl.BlockSpec((tm, tn), lambda i, j: (i, j)))
        args.append(residual)
        if scale is not None:
            in_specs.append(pl.BlockSpec((tm, 1), lambda i, j: (i, 0)))
            args.append(scale)
    if post_ln is not None:
        in_specs += [pl.BlockSpec((1, tn), lambda i, j: (0, 0)),
                     pl.BlockSpec((1, tn), lambda i, j: (0, 0))]
        args += [post_ln[0], post_ln[1]]

    kernel = functools.partial(
        _fused_linear_kernel,
        pre_ln=pre_ln is not None, has_bias=bias is not None,
        activation=activation, has_residual=residual is not None,
        has_scale=(residual is not None and scale is not None),
        post_ln=post_ln is not None, eps=eps)

    return pl.pallas_call(
        kernel,
        out_shape=jax.ShapeDtypeStruct((M, Nout), out_dtype),
        grid_spec=pltpu.PrefetchScalarGridSpec(
            num_scalar_prefetch=0,
            grid=grid,
            in_specs=in_specs,
            out_specs=pl.BlockSpec((tm, tn), lambda i, j: (i, j)),
        ),
        compiler_params=_cp("parallel", "parallel"),
    )(*args)


# --------------------------------------------------------------------------
# Attention: flash-style kv tiling, all heads of one batch per grid step.
# Input is the raw (B, N, 3D) qkv tensor; q/k/v selected via column-block
# index_map, heads split in-kernel. Output is lane-dense (1, tq, D).
# --------------------------------------------------------------------------
def _attention_kernel(q_ref, k_ref, v_ref, o_ref, m_sc, l_sc, acc_sc, *,
                      scale, nheads, head_dim):
    ki = pl.program_id(2)

    @pl.when(ki == 0)
    def _():
        m_sc[...] = jnp.full_like(m_sc, -jnp.inf)
        l_sc[...] = jnp.zeros_like(l_sc)
        acc_sc[...] = jnp.zeros_like(acc_sc)

    q = q_ref[0]        # (tq,  D) — all heads packed in lanes
    k = k_ref[0]        # (tkv, D)
    v = v_ref[0]        # (tkv, D)

    for h in range(nheads):                                   # static unroll over heads
        sl = slice(h * head_dim, (h + 1) * head_dim)
        qh = (q[:, sl].astype(jnp.float32) * scale).astype(jnp.bfloat16)
        kh = k[:, sl].astype(jnp.bfloat16)
        vh = v[:, sl].astype(jnp.bfloat16)
        s = jax.lax.dot_general(qh, kh, (((1,), (1,)), ((), ())),
                                preferred_element_type=jnp.float32)   # (tq, tkv)
        m_prev = m_sc[h]                                      # (tq, 1)
        m_new = jnp.maximum(m_prev, jnp.max(s, axis=-1, keepdims=True))
        alpha = jnp.exp(m_prev - m_new)
        p = jnp.exp(s - m_new)
        l_sc[h] = alpha * l_sc[h] + jnp.sum(p, axis=-1, keepdims=True)
        acc_sc[h] = alpha * acc_sc[h] + jnp.dot(
            p.astype(jnp.bfloat16), vh, preferred_element_type=jnp.float32)
        m_sc[h] = m_new

    @pl.when(ki == pl.num_programs(2) - 1)
    def _():
        outs = []
        for h in range(nheads):
            inv = pl.reciprocal(l_sc[h], approx=True)         # deferred softmax normalization
            outs.append(acc_sc[h] * inv)
        o_ref[0] = jnp.concatenate(outs, axis=-1).astype(o_ref.dtype)  # lane-dense (tq, D)


def attention(qkv, nheads, head_dim, scale, *, out_dtype,
              tq_target=256, tkv_target=512):
    B, N, threeD = qkv.shape
    D = nheads * head_dim
    assert threeD == 3 * D
    assert D % 128 == 0, "attention kernel assumes d_model is a multiple of 128 (lane-aligned)"
    tq = _pick_tile(N, tq_target, 16)
    tkv = _pick_tile(N, tkv_target, 16)
    kernel = functools.partial(_attention_kernel, scale=scale, nheads=nheads,
                               head_dim=head_dim)
    return pl.pallas_call(
        kernel,
        out_shape=jax.ShapeDtypeStruct((B, N, D), out_dtype),
        grid_spec=pltpu.PrefetchScalarGridSpec(
            num_scalar_prefetch=0,
            grid=(B, N // tq, N // tkv),
            in_specs=[
                pl.BlockSpec((1, tq, D), lambda b, qi, ki: (b, qi, 0)),   # q columns
                pl.BlockSpec((1, tkv, D), lambda b, qi, ki: (b, ki, 1)),  # k columns
                pl.BlockSpec((1, tkv, D), lambda b, qi, ki: (b, ki, 2)),  # v columns
            ],
            out_specs=pl.BlockSpec((1, tq, D), lambda b, qi, ki: (b, qi, 0)),
            scratch_shapes=[
                pltpu.VMEM((nheads, tq, 1), jnp.float32),         # running max
                pltpu.VMEM((nheads, tq, 1), jnp.float32),         # running sum
                pltpu.VMEM((nheads, tq, head_dim), jnp.float32),  # unnormalized acc
            ],
        ),
        compiler_params=_cp("parallel", "parallel", "arbitrary"),
    )(qkv, qkv, qkv)


# --------------------------------------------------------------------------
# Full layer
# --------------------------------------------------------------------------
class TransformerEncoderLayerPallas:
    def __init__(self, d_model, nhead, dim_feedforward=2048, dropout=0.1,
                 attention_dropout=0.1, drop_path_rate=0.1, *, key):
        assert d_model % nhead == 0
        self.d_model = d_model
        self.nhead = nhead
        self.head_dim = d_model // nhead
        self.attn_scale = self.head_dim ** (-0.5)
        self.drop_path_rate = drop_path_rate
        self.training = False   # eval-mode forward (element-wise dropout is identity)

        ks = jax.random.split(key, 6)
        wbf = lambda k, s: (0.02 * jax.random.normal(k, s, jnp.float32)).astype(jnp.bfloat16)
        bf32 = lambda k, s: 0.02 * jax.random.normal(k, s, jnp.float32)
        self.params = dict(
            ln0_g=jnp.ones((1, d_model), jnp.float32),
            ln0_b=jnp.zeros((1, d_model), jnp.float32),
            w_qkv=wbf(ks[0], (d_model, 3 * d_model)),         # qkv Linear has bias=False
            w_proj=wbf(ks[1], (d_model, d_model)),
            b_proj=bf32(ks[2], (1, d_model)),
            ln1_g=jnp.ones((1, d_model), jnp.float32),
            ln1_b=jnp.zeros((1, d_model), jnp.float32),
            w1=wbf(ks[3], (d_model, dim_feedforward)),
            b1=bf32(ks[4], (1, dim_feedforward)),
            w2=wbf(ks[5], (dim_feedforward, d_model)),
            b2=jnp.zeros((1, d_model), jnp.float32),
        )

    def _drop_path_scales(self, B, N, rng):
        """Per-row DropPath scales (M, 1) in f32, or (None, None) in eval mode."""
        if (not self.training) or self.drop_path_rate <= 0.0:
            return None, None
        assert rng is not None, "training DropPath needs an rng key"
        keep = 1.0 - self.drop_path_rate
        k1, k2 = jax.random.split(rng)

        def per_row(k):
            mask = jnp.floor(keep + jax.random.uniform(k, (B,), dtype=jnp.float32))
            return jnp.repeat(mask * (1.0 / keep), N)[:, None]   # (B*N, 1)

        return per_row(k1), per_row(k2)

    def __call__(self, src, *, rng=None):
        p = self.params
        B, N, D = src.shape
        M = B * N
        x2d = src.reshape(M, D)
        s1, s2 = self._drop_path_scales(B, N, rng)

        # 1) pre_norm + QKV projection (bias=False), output in bf16
        qkv = fused_linear(x2d, p["w_qkv"],
                           pre_ln=(p["ln0_g"], p["ln0_b"]),
                           out_dtype=jnp.bfloat16)                       # (M, 3D)

        # 2) flash attention over all heads of each batch (no HBM transposes)
        attn = attention(qkv.reshape(B, N, 3 * D), self.nhead, self.head_dim,
                         self.attn_scale, out_dtype=jnp.bfloat16)        # (B, N, D)

        # 3) output projection + bias + residual*DropPath + norm1, all fused
        normed = fused_linear(attn.reshape(M, D), p["w_proj"], bias=p["b_proj"],
                              residual=x2d, scale=s1,
                              post_ln=(p["ln1_g"], p["ln1_b"]),
                              out_dtype=src.dtype)                       # (M, D)

        # 4) FFN up-projection + tanh-GELU
        h = fused_linear(normed, p["w1"], bias=p["b1"], activation="gelu",
                         out_dtype=jnp.bfloat16)                         # (M, FF)

        # 5) FFN down-projection + bias + residual*DropPath
        out = fused_linear(h, p["w2"], bias=p["b2"], residual=normed, scale=s2,
                           out_dtype=src.dtype)                          # (M, D)
        return out.reshape(B, N, D)


# --------------------------------------------------------------------------
# Pure-JAX reference (same tanh-GELU, same bf16-quantized weights) for the check
# --------------------------------------------------------------------------
def _reference_forward(p, src, nhead):
    B, N, D = src.shape
    hd = D // nhead
    f32 = lambda a: a.astype(jnp.float32)

    def ln(x, g, b, eps=1e-5):
        mu = jnp.mean(x, -1, keepdims=True)
        var = jnp.mean((x - mu) ** 2, -1, keepdims=True)
        return (x - mu) * jax.lax.rsqrt(var + eps) * g.reshape(-1) + b.reshape(-1)

    x = ln(src, p["ln0_g"], p["ln0_b"])
    qkv = x @ f32(p["w_qkv"])
    qkv = qkv.reshape(B, N, 3, nhead, hd).transpose(2, 0, 3, 1, 4)
    q, k, v = qkv[0], qkv[1], qkv[2]
    attn = jnp.einsum("bhqd,bhkd->bhqk", q, k) * (hd ** -0.5)
    attn = jax.nn.softmax(attn, axis=-1)
    y = jnp.einsum("bhqk,bhkd->bhqd", attn, v).transpose(0, 2, 1, 3).reshape(B, N, D)
    y = y @ f32(p["w_proj"]) + p["b_proj"].reshape(-1)
    src = src + y
    src = ln(src, p["ln1_g"], p["ln1_b"])
    h = _tanh_gelu(src @ f32(p["w1"]) + p["b1"].reshape(-1))
    y2 = h @ f32(p["w2"]) + p["b2"].reshape(-1)
    return src + y2


if __name__ == "__main__":
    key = jax.random.PRNGKey(0)
    kparams, kx = jax.random.split(key)

    # Small, lane-aligned shapes: d_model multiple of 128 keeps stores unmasked.
    B, N, D, H, FF = 2, 16, 128, 4, 256
    layer = TransformerEncoderLayerPallas(
        d_model=D, nhead=H, dim_feedforward=FF,
        dropout=0.1, attention_dropout=0.1, drop_path_rate=0.1, key=kparams,
    )
    src = jax.random.normal(kx, (B, N, D), dtype=jnp.float32)

    # Eval-mode forward (deterministic) + reference check (bf16 MXU -> loose tolerance).
    out = jax.block_until_ready(layer(src))
    ref = _reference_forward(layer.params, src, H)
    assert out.shape == src.shape
    err = float(jnp.max(jnp.abs(out - ref)))
    assert err < 5e-2, f"mismatch vs reference: max abs err = {err}"

    # Training-mode DropPath path also executes (per-row scale fused in linear epilogues).
    layer.training = True
    out_t = jax.block_until_ready(layer(src, rng=jax.random.PRNGKey(42)))
    assert out_t.shape == src.shape

    print("KERNEL_OK")
</pallas_src>

<mosaic_0001>
module attributes {stable_mosaic.version = 11 : i64} {
  func.func @_fused_linear_kernel(%arg0: i32, %arg1: i32, %arg2: memref<32x128xf32, #tpu.memory_space<vmem>>, %arg3: memref<1x128xf32, #tpu.memory_space<vmem>>, %arg4: memref<1x128xf32, #tpu.memory_space<vmem>>, %arg5: memref<128x384xbf16, #tpu.memory_space<vmem>>, %arg6: memref<32x384xbf16, #tpu.memory_space<vmem>>) attributes {dimension_semantics = [#tpu.dimension_semantics<parallel>, #tpu.dimension_semantics<parallel>], iteration_bounds = array<i64: 1, 1>, scalar_prefetch = 0 : i64, scratch_operands = 0 : i64, tpu.core_type = #tpu.core_type<tc>, window_params = [{transform_indices = @transform_0, window_bounds = array<i64: 32, 128>}, {pipeline_mode = #tpu.pipeline_mode<synchronous>, transform_indices = @transform_1, window_bounds = array<i64: 1, 128>}, {pipeline_mode = #tpu.pipeline_mode<synchronous>, transform_indices = @transform_2, window_bounds = array<i64: 1, 128>}, {transform_indices = @transform_3, window_bounds = array<i64: 128, 384>}, {transform_indices = @transform_4, window_bounds = array<i64: 32, 384>}]} {
    %c0 = arith.constant 0 : index
    %c0_0 = arith.constant 0 : index
    %0 = vector.load %arg2[%c0, %c0_0] : memref<32x128xf32, #tpu.memory_space<vmem>>, vector<32x128xf32>
    %c0_1 = arith.constant 0 : index
    %c0_2 = arith.constant 0 : index
    %1 = vector.load %arg3[%c0_1, %c0_2] : memref<1x128xf32, #tpu.memory_space<vmem>>, vector<1x128xf32>
    %c0_3 = arith.constant 0 : index
    %c0_4 = arith.constant 0 : index
    %2 = vector.load %arg4[%c0_3, %c0_4] : memref<1x128xf32, #tpu.memory_space<vmem>>, vector<1x128xf32>
    %cst = arith.constant dense<0.000000e+00> : vector<32xf32>
    %3 = vector.multi_reduction <add>, %0, %cst [1] : vector<32x128xf32> to vector<32xf32>
    %4 = vector.shape_cast %3 : vector<32xf32> to vector<32x1xf32>
    %cst_5 = arith.constant 1.280000e+02 : f32
    %5 = vector.broadcast %cst_5 : f32 to vector<32x1xf32>
    %6 = arith.divf %4, %5 : vector<32x1xf32>
    %7 = vector.broadcast %6 : vector<32x1xf32> to vector<32x128xf32>
    %8 = arith.subf %0, %7 : vector<32x128xf32>
    %9 = arith.mulf %8, %8 : vector<32x128xf32>
    %cst_6 = arith.constant dense<0.000000e+00> : vector<32xf32>
    %10 = vector.multi_reduction <add>, %9, %cst_6 [1] : vector<32x128xf32> to vector<32xf32>
    %11 = vector.shape_cast %10 : vector<32xf32> to vector<32x1xf32>
    %cst_7 = arith.constant 1.280000e+02 : f32
    %12 = vector.broadcast %cst_7 : f32 to vector<32x1xf32>
    %13 = arith.divf %11, %12 : vector<32x1xf32>
    %cst_8 = arith.constant 9.99999974E-6 : f32
    %14 = vector.broadcast %cst_8 : f32 to vector<32x1xf32>
    %15 = arith.addf %13, %14 : vector<32x1xf32>
    %16 = math.rsqrt %15 : vector<32x1xf32>
    %17 = vector.broadcast %16 : vector<32x1xf32> to vector<32x128xf32>
    %18 = arith.mulf %8, %17 : vector<32x128xf32>
    %19 = vector.broadcast %1 : vector<1x128xf32> to vector<32x128xf32>
    %20 = arith.mulf %18, %19 : vector<32x128xf32>
    %21 = vector.broadcast %2 : vector<1x128xf32> to vector<32x128xf32>
    %22 = arith.addf %20, %21 : vector<32x128xf32>
    %23 = arith.truncf %22 : vector<32x128xf32> to vector<32x128xbf16>
    %c0_9 = arith.constant 0 : index
    %c0_10 = arith.constant 0 : index
    %24 = vector.load %arg5[%c0_9, %c0_10] : memref<128x384xbf16, #tpu.memory_space<vmem>>, vector<128x384xbf16>
    %cst_11 = arith.constant dense<0.000000e+00> : vector<32x384xf32>
    %25 = tpu.matmul %23, %24, %cst_11 {dimension_numbers = #tpu.dot_dimension_numbers<[1], [0], [0], [1], [0, 0, 1, 1], [], []>} : vector<32x128xbf16>, vector<128x384xbf16>, vector<32x384xf32> -> vector<32x384xf32>
    %26 = arith.truncf %25 : vector<32x384xf32> to vector<32x384xbf16>
    %c0_12 = arith.constant 0 : index
    %c0_13 = arith.constant 0 : index
    %27 = vector.load %arg6[%c0_12, %c0_13] : memref<32x384xbf16, #tpu.memory_space<vmem>>, vector<32x384xbf16>
    tpu.vector_store %arg6[%c0_12, %c0_13], %26 {strides = array<i32>} : memref<32x384xbf16, #tpu.memory_space<vmem>>, vector<32x384xbf16>,
    return
  }
  func.func @transform_0(%arg0: i32, %arg1: i32) -> (i32, i32) {
    %c0_i32 = arith.constant 0 : i32
    %c0_i32_0 = arith.constant 0 : i32
    return %arg0, %c0_i32 : i32, i32
  }
  func.func @transform_1(%arg0: i32, %arg1: i32) -> (i32, i32) {
    %c0_i32 = arith.constant 0 : i32
    %c0_i32_0 = arith.constant 0 : i32
    %c0_i32_1 = arith.constant 0 : i32
    return %c0_i32, %c0_i32_0 : i32, i32
  }
  func.func @transform_2(%arg0: i32, %arg1: i32) -> (i32, i32) {
    %c0_i32 = arith.constant 0 : i32
    %c0_i32_0 = arith.constant 0 : i32
    %c0_i32_1 = arith.constant 0 : i32
    return %c0_i32, %c0_i32_0 : i32, i32
  }
  func.func @transform_3(%arg0: i32, %arg1: i32) -> (i32, i32) {
    %c0_i32 = arith.constant 0 : i32
    %c0_i32_0 = arith.constant 0 : i32
    return %c0_i32, %arg1 : i32, i32
  }
  func.func @transform_4(%arg0: i32, %arg1: i32) -> (i32, i32) {
    %c0_i32 = arith.constant 0 : i32
    return %arg0, %arg1 : i32, i32
  }
}

</mosaic_0001>

<llo_original>
// kernel: tpu_custom_call.1
$region0: #{tpu_custom_call.1}
  #allocation0 [shape = 'u32[]', space=smem, size = 0x4, offset = 0x4, fixed_abs, tag = 'smem constant byte address 0x4 - core index']
  #allocation1 [shape = 'u32[144,128]{1,0:T(1,128)}', space=vmem, size = 0x12000, scoped, tag = 'internal scratch']
  %s0 = inlined_call_operand.hbm [shape: f32[32,128], index: 0, kind: input, shape index: {}]
  %s1 = inlined_call_operand.vmem [shape: f32[1,128], index: 1, kind: input, shape index: {}]
  %s2 = inlined_call_operand.vmem [shape: f32[1,128], index: 2, kind: input, shape index: {}]
  %s3 = inlined_call_operand.hbm [shape: bf16[128,384], index: 3, kind: input, shape index: {}]
  %s4 = inlined_call_operand.hbm [shape: bf16[32,384], index: 4, kind: output, shape index: {}]
  %s5 = sld [smem:[#allocation0]]
  $region34: #{tpu_custom_call.1} parent=0
    _
  %s7 = ssub.s32 1, %s5
  %s8 = scalar_select 0, %s7, %s5
  $region1: #{tpu_custom_call.1} parent=0
    #allocation2 [shape = 'u8[16384]{0}', space=vmem, size = 0x4000, scoped, tag = 'input window, operand 0, single buffered']
    #allocation3 [shape = 's32[1]{0}', space=sflag, size = 0x4, scoped, tag = 'scoped memory for tpu_custom_call.1']
    #allocation4 [shape = 's32[1]{0}', space=sflag, size = 0x4, scoped, tag = 'scoped memory for tpu_custom_call.1']
    #allocation5 [shape = 'u8[98304]{0}', space=vmem, size = 0x18000, scoped, tag = 'input window, operand 3, single buffered']
    #allocation6 [shape = 's32[1]{0}', space=sflag, size = 0x4, scoped, tag = 'scoped memory for tpu_custom_call.1']
    #allocation7 [shape = 'u8[24576]{0}', space=vmem, size = 0x6000, scoped, tag = 'output window, operand 0, single buffered']
    %9 = vsyncpa [#allocation3], 0
    %10 = vsyncpa [#allocation6], 0
    %11 = vsyncpa [#allocation4], 0
    // Predicated region
    $region2: #{tpu_custom_call.1} parent=1 // pred_check
      _
    $region3: #{tpu_custom_call.1} parent=1 // pred_check_branch
      %13 = sbr.rel (0) target = $region5
    $region4: #{tpu_custom_call.1} parent=1 // pred_region
      %s15 = ssub.s32 512, 512
      %16 = vsyncadd [#allocation3], %s15
      %s17 = sshll.u32 [#allocation2], 4
      %s18 = int_to_ptr.vmem [resolvable:$true] %s17
      %23 = dma.hbm_to_vmem [thread:$0]  %s0, 512, %s18, [#allocation3], 128, 128, 8
    $region5: #{tpu_custom_call.1} parent=1 // pred_fallthru
      _
    // Predicated region
    $region6: #{tpu_custom_call.1} parent=1 // pred_check
      _
    $region7: #{tpu_custom_call.1} parent=1 // pred_check_branch
      %25 = sbr.rel (0) target = $region9
    $region8: #{tpu_custom_call.1} parent=1 // pred_region
      _
    $region9: #{tpu_custom_call.1} parent=1 // pred_fallthru
      _
    // Predicated region
    $region10: #{tpu_custom_call.1} parent=1 // pred_check
      _
    $region11: #{tpu_custom_call.1} parent=1 // pred_check_branch
      %27 = sbr.rel (0) target = $region13
    $region12: #{tpu_custom_call.1} parent=1 // pred_region
      _
    $region13: #{tpu_custom_call.1} parent=1 // pred_fallthru
      _
    // Predicated region
    $region14: #{tpu_custom_call.1} parent=1 // pred_check
      _
    $region15: #{tpu_custom_call.1} parent=1 // pred_check_branch
      %29 = sbr.rel (0) target = $region17
    $region16: #{tpu_custom_call.1} parent=1 // pred_region
      %s31 = ssub.s32 3072, 3072
      %32 = vsyncadd [#allocation6], %s31
      %s33 = sshll.u32 [#allocation5], 4
      %s34 = int_to_ptr.vmem [resolvable:$true] %s33
      %39 = dma.hbm_to_vmem [thread:$0]  %s3, 3072, %s34, [#allocation6], 192, 192, 12
    $region17: #{tpu_custom_call.1} parent=1 // pred_fallthru
      _
    // Predicated region
    $region18: #{tpu_custom_call.1} parent=1 // pred_check
      _
    $region19: #{tpu_custom_call.1} parent=1 // pred_check_branch
      %41 = sbr.rel (0) target = $region21
    $region20: #{tpu_custom_call.1} parent=1 // pred_region
      %42 = dma.done [#allocation3], 512
    $region21: #{tpu_custom_call.1} parent=1 // pred_fallthru
      _
    // Predicated region
    $region22: #{tpu_custom_call.1} parent=1 // pred_check
      _
    $region23: #{tpu_custom_call.1} parent=1 // pred_check_branch
      %44 = sbr.rel (0) target = $region25
    $region24: #{tpu_custom_call.1} parent=1 // pred_region
      %45 = dma.done [#allocation6], 3072
    $region25: #{tpu_custom_call.1} parent=1 // pred_fallthru
      _
    %v47 = vld [vmem:[#allocation2] sm:$0xff]
    %v48 = vld [vmem:[#allocation2 + $0x8] sm:$0xff]
    %v49 = vld [vmem:[#allocation2 + $0x10] sm:$0xff]
    %v50 = vld [vmem:[#allocation2 + $0x18] sm:$0xff]
    %v51 = vld [vmem:[%s1] sm:$0x1]
    %v52 = vld [vmem:[%s2] sm:$0x1]
    %53 = vadd.xlane.f32.xlu0 %v47
    %v54 = vpop.xlane.xlu0 %53
    %55 = vadd.xlane.f32.xlu0 %v48
    %v56 = vpop.xlane.xlu0 %55
    %57 = vadd.xlane.f32.xlu0 %v49
    %v58 = vpop.xlane.xlu0 %57
    %59 = vadd.xlane.f32.xlu0 %v50
    %v60 = vpop.xlane.xlu0 %59
    %v61 = vrcp.pop 128.0
    %v62 = vmul.f32 %v54, %v61
    %v63 = vmul.f32 %v56, %v61
    %v64 = vmul.f32 %v58, %v61
    %v65 = vmul.f32 %v60, %v61
    %v66 = vsub.f32 %v47, %v62
    %v67 = vsub.f32 %v48, %v63
    %v68 = vsub.f32 %v49, %v64
    %v69 = vsub.f32 %v50, %v65
    %v70 = vmul.f32 %v66, %v66
    %v71 = vmul.f32 %v67, %v67
    %v72 = vmul.f32 %v68, %v68
    %v73 = vmul.f32 %v69, %v69
    %74 = vadd.xlane.f32.xlu0 %v70
    %v75 = vpop.xlane.xlu0 %74
    %76 = vadd.xlane.f32.xlu0 %v71
    %v77 = vpop.xlane.xlu0 %76
    %78 = vadd.xlane.f32.xlu0 %v72
    %v79 = vpop.xlane.xlu0 %78
    %80 = vadd.xlane.f32.xlu0 %v73
    %v81 = vpop.xlane.xlu0 %80
    %v82 = vmul.f32 %v75, %v61
    %v83 = vmul.f32 %v77, %v61
    %v84 = vmul.f32 %v79, %v61
    %v85 = vmul.f32 %v81, %v61
    %v86 = vadd.f32 %v82, 1e-05
    %v87 = vadd.f32 %v83, 1e-05
    %v88 = vadd.f32 %v84, 1e-05
    %v89 = vadd.f32 %v85, 1e-05
    %v90 = vrsqrt.pop %v86
    %v91 = vrsqrt.pop %v87
    %v92 = vrsqrt.pop %v88
    %v93 = vrsqrt.pop %v89
    %v94 = vmul.f32 %v66, %v90
    %v95 = vmul.f32 %v67, %v91
    %v96 = vmul.f32 %v68, %v92
    %v97 = vmul.f32 %v69, %v93
    %v99 = vlaneseq
    %v100 = vshrl.u32 %v99, 7
    %v101 = vsub.s32 0, %v100
    %v102 = vrot.slane %v51, %v101
    %v104 = vmul.f32 %v94, %v102
    %v105 = vmul.f32 %v95, %v102
    %v106 = vmul.f32 %v96, %v102
    %v107 = vmul.f32 %v97, %v102
    %v109 = vlaneseq
    %v110 = vshrl.u32 %v109, 7
    %v111 = vsub.s32 0, %v110
    %v112 = vrot.slane %v52, %v111
    %v114 = vadd.f32 %v104, %v112
    %v115 = vadd.f32 %v105, %v112
    %v116 = vadd.f32 %v106, %v112
    %v117 = vadd.f32 %v107, %v112
    %v118 = vpack.c.bf16 %v115, %v114
    %v119 = vpack.c.bf16 %v117, %v116
    %v120 = vld [vmem:[#allocation5] sm:$0xff]
    %v121 = vld [vmem:[#allocation5 + $0x8] sm:$0xf]
    %v122 = vld [vmem:[#allocation5 + $0xc] sm:$0xff]
    %v123 = vld [vmem:[#allocation5 + $0x14] sm:$0xf]
    %v124 = vld [vmem:[#allocation5 + $0x18] sm:$0xff]
    %v125 = vld [vmem:[#allocation5 + $0x20] sm:$0xf]
    %v126 = vld [vmem:[#allocation5 + $0x24] sm:$0xff]
    %v127 = vld [vmem:[#allocation5 + $0x2c] sm:$0xf]
    %v128 = vld [vmem:[#allocation5 + $0x30] sm:$0xff]
    %v129 = vld [vmem:[#allocation5 + $0x38] sm:$0xf]
    %v130 = vld [vmem:[#allocation5 + $0x3c] sm:$0xff]
    %v131 = vld [vmem:[#allocation5 + $0x44] sm:$0xf]
    %v132 = vld [vmem:[#allocation5 + $0x48] sm:$0xff]
    %v133 = vld [vmem:[#allocation5 + $0x50] sm:$0xf]
    %v134 = vld [vmem:[#allocation5 + $0x54] sm:$0xff]
    %v135 = vld [vmem:[#allocation5 + $0x5c] sm:$0xf]
    %v136 = vld [vmem:[#allocation5 + $0x60] sm:$0xff]
    %v137 = vld [vmem:[#allocation5 + $0x68] sm:$0xf]
    %v138 = vld [vmem:[#allocation5 + $0x6c] sm:$0xff]
    %v139 = vld [vmem:[#allocation5 + $0x74] sm:$0xf]
    %v140 = vld [vmem:[#allocation5 + $0x78] sm:$0xff]
    %v141 = vld [vmem:[#allocation5 + $0x80] sm:$0xf]
    %v142 = vld [vmem:[#allocation5 + $0x84] sm:$0xff]
    %v143 = vld [vmem:[#allocation5 + $0x8c] sm:$0xf]
    %v144 = vld [vmem:[#allocation5 + $0x90] sm:$0xff]
    %v145 = vld [vmem:[#allocation5 + $0x98] sm:$0xf]
    %v146 = vld [vmem:[#allocation5 + $0x9c] sm:$0xff]
    %v147 = vld [vmem:[#allocation5 + $0xa4] sm:$0xf]
    %v148 = vld [vmem:[#allocation5 + $0xa8] sm:$0xff]
    %v149 = vld [vmem:[#allocation5 + $0xb0] sm:$0xf]
    %v150 = vld [vmem:[#allocation5 + $0xb4] sm:$0xff]
    %v151 = vld [vmem:[#allocation5 + $0xbc] sm:$0xf]
    %v184 = vunpack.c.l.b16 %v120
    %v185 = vunpack.c.h.b16 %v120
    %v186 = vunpack.c.l.b16 %v121
    %v187 = vunpack.c.l.b16 %v122
    %v188 = vunpack.c.h.b16 %v122
    %v189 = vunpack.c.l.b16 %v123
    %v190 = vunpack.c.l.b16 %v124
    %v191 = vunpack.c.h.b16 %v124
    %v192 = vunpack.c.l.b16 %v125
    %v193 = vunpack.c.l.b16 %v126
    %v194 = vunpack.c.h.b16 %v126
    %v195 = vunpack.c.l.b16 %v127
    %v196 = vunpack.c.l.b16 %v128
    %v197 = vunpack.c.h.b16 %v128
    %v198 = vunpack.c.l.b16 %v129
    %v199 = vunpack.c.l.b16 %v130
    %v200 = vunpack.c.h.b16 %v130
    %v201 = vunpack.c.l.b16 %v131
    %v202 = vunpack.c.l.b16 %v132
    %v203 = vunpack.c.h.b16 %v132
    %v204 = vunpack.c.l.b16 %v133
    %v205 = vunpack.c.l.b16 %v134
    %v206 = vunpack.c.h.b16 %v134
    %v207 = vunpack.c.l.b16 %v135
    %v208 = vunpack.c.l.b16 %v136
    %v209 = vunpack.c.h.b16 %v136
    %v210 = vunpack.c.l.b16 %v137
    %v211 = vunpack.c.l.b16 %v138
    %v212 = vunpack.c.h.b16 %v138
    %v213 = vunpack.c.l.b16 %v139
    %v214 = vunpack.c.l.b16 %v140
    %v215 = vunpack.c.h.b16 %v140
    %v216 = vunpack.c.l.b16 %v141
    %v217 = vunpack.c.l.b16 %v142
    %v218 = vunpack.c.h.b16 %v142
    %v219 = vunpack.c.l.b16 %v143
    %v220 = vunpack.c.l.b16 %v144
    %v221 = vunpack.c.h.b16 %v144
    %v222 = vunpack.c.l.b16 %v145
    %v223 = vunpack.c.l.b16 %v146
    %v224 = vunpack.c.h.b16 %v146
    %v225 = vunpack.c.l.b16 %v147
    %v226 = vunpack.c.l.b16 %v148
    %v227 = vunpack.c.h.b16 %v148
    %v228 = vunpack.c.l.b16 %v149
    %v229 = vunpack.c.l.b16 %v150
    %v230 = vunpack.c.h.b16 %v150
    %v231 = vunpack.c.l.b16 %v151
    %v232 = vpack.c.b16 %v187, %v184
    %v233 = vpack.c.b16 %v188, %v185
    %v234 = vpack.c.b16 %v189, %v186
    %v235 = vpack.c.b16 %v193, %v190
    %v236 = vpack.c.b16 %v194, %v191
    %v237 = vpack.c.b16 %v195, %v192
    %v238 = vpack.c.b16 %v199, %v196
    %v239 = vpack.c.b16 %v200, %v197
    %v240 = vpack.c.b16 %v201, %v198
    %v241 = vpack.c.b16 %v205, %v202
    %v242 = vpack.c.b16 %v206, %v203
    %v243 = vpack.c.b16 %v207, %v204
    %v244 = vpack.c.b16 %v211, %v208
    %v245 = vpack.c.b16 %v212, %v209
    %v246 = vpack.c.b16 %v213, %v210
    %v247 = vpack.c.b16 %v217, %v214
    %v248 = vpack.c.b16 %v218, %v215
    %v249 = vpack.c.b16 %v219, %v216
    %v250 = vpack.c.b16 %v223, %v220
    %v251 = vpack.c.b16 %v224, %v221
    %v252 = vpack.c.b16 %v225, %v222
    %v253 = vpack.c.b16 %v229, %v226
    %v254 = vpack.c.b16 %v230, %v227
    %v255 = vpack.c.b16 %v231, %v228
    %280 = vmatprep.subr.bf16.mxu0 %v254
    %281 = vmatpush1.bf16.msra.mxu0 %v253
    %282 = vmatprep.subr.bf16.mxu0 %v251
    %283 = vmatpush1.bf16.msra.mxu0 %v250
    %284 = vmatprep.subr.bf16.mxu0 %v248
    %285 = vmatpush1.bf16.msra.mxu0 %v247
    %286 = vmatprep.subr.bf16.mxu0 %v245
    %287 = vmatpush1.bf16.msra.mxu0 %v244
    %288 = vmatprep.subr.bf16.mxu0 %v242
    %289 = vmatpush1.bf16.msra.mxu0 %v241
    %290 = vmatprep.subr.bf16.mxu0 %v239
    %291 = vmatpush1.bf16.msra.mxu0 %v238
    %292 = vmatprep.subr.bf16.mxu0 %v236
    %293 = vmatpush1.bf16.msra.mxu0 %v235
    %294 = vmatprep.subr.bf16.mxu0 %v233
    %295 = vmatpush1.bf16.msra.mxu0 %v232
    %296 = vmatprep.subr.bf16.mxu0 0
    %297 = vmatpush2.bf16.msra.mxu0 0
    %298 = vmatprep.subr.bf16.mxu0 0
    %299 = vmatpush2.bf16.msra.mxu0 0
    %300 = vmatprep.subr.bf16.mxu0 0
    %301 = vmatpush2.bf16.msra.mxu0 0
    %302 = vmatprep.subr.bf16.mxu0 0
    %303 = vmatpush2.bf16.msra.mxu0 0
    %304 = vmatprep.subr.bf16.mxu0 0
    %305 = vmatpush2.bf16.msra.mxu0 0
    %306 = vmatprep.subr.bf16.mxu0 0
    %307 = vmatpush2.bf16.msra.mxu0 0
    %308 = vmatprep.subr.bf16.mxu0 0
    %309 = vmatpush2.bf16.msra.mxu0 0
    %310 = vmatprep.subr.bf16.mxu0 0
    %311 = vmatpush2.bf16.msra.mxu0 0
    %312 = vmatprep.mubr.bf16.mxu0 0
    %313 = vmatmul.mubr.bf16.gmra.mxu0 %v118
    %v314 = vpop.f32.mrf.mxu0
    %v315 = vadd.f32 0.0, %v314
    %v316 = vpop.f32.mrf.mxu0
    %v317 = vadd.f32 0.0, %v316
    %v318 = vpop.f32.mrf.mxu0
    %v319 = vadd.f32 0.0, %v318
    %v320 = vpop.f32.mrf.mxu0
    %v321 = vadd.f32 0.0, %v320
    %322 = vmatprep.mubr.bf16.mxu0 0
    %323 = vmatmul.mubr.bf16.gmra.mxu0 %v119
    %v324 = vpop.f32.mrf.mxu0
    %v325 = vadd.f32 0.0, %v324
    %v326 = vpop.f32.mrf.mxu0
    %v327 = vadd.f32 0.0, %v326
    %v328 = vpop.f32.mrf.mxu0
    %v329 = vadd.f32 0.0, %v328
    %v330 = vpop.f32.mrf.mxu0
    %v331 = vadd.f32 0.0, %v330
    %332 = vdwg.mxu0
    %333 = vmatprep.subr.bf16.mxu0 0
    %334 = vmatpush1.bf16.msra.mxu0 %v255
    %335 = vmatprep.subr.bf16.mxu0 0
    %336 = vmatpush1.bf16.msra.mxu0 %v252
    %337 = vmatprep.subr.bf16.mxu0 0
    %338 = vmatpush1.bf16.msra.mxu0 %v249
    %339 = vmatprep.subr.bf16.mxu0 0
    %340 = vmatpush1.bf16.msra.mxu0 %v246
    %341 = vmatprep.subr.bf16.mxu0 0
    %342 = vmatpush1.bf16.msra.mxu0 %v243
    %343 = vmatprep.subr.bf16.mxu0 0
    %344 = vmatpush1.bf16.msra.mxu0 %v240
    %345 = vmatprep.subr.bf16.mxu0 0
    %346 = vmatpush1.bf16.msra.mxu0 %v237
    %347 = vmatprep.subr.bf16.mxu0 0
    %348 = vmatpush1.bf16.msra.mxu0 %v234
    %349 = vmatprep.subr.bf16.mxu0 0
    %350 = vmatpush2.bf16.msra.mxu0 0
    %351 = vmatprep.subr.bf16.mxu0 0
    %352 = vmatpush2.bf16.msra.mxu0 0
    %353 = vmatprep.subr.bf16.mxu0 0
    %354 = vmatpush2.bf16.msra.mxu0 0
    %355 = vmatprep.subr.bf16.mxu0 0
    %356 = vmatpush2.bf16.msra.mxu0 0
    %357 = vmatprep.subr.bf16.mxu0 0
    %358 = vmatpush2.bf16.msra.mxu0 0
    %359 = vmatprep.subr.bf16.mxu0 0
    %360 = vmatpush2.bf16.msra.mxu0 0
    %361 = vmatprep.subr.bf16.mxu0 0
    %362 = vmatpush2.bf16.msra.mxu0 0
    %363 = vmatprep.subr.bf16.mxu0 0
    %364 = vmatpush2.bf16.msra.mxu0 0
    %365 = vmatprep.mubr.bf16.mxu0 0
    %366 = vmatmul.mubr.bf16.gmra.mxu0 %v118
    %v367 = vpop.f32.mrf.mxu0
    %v368 = vadd.f32 0.0, %v367
    %v369 = vpop.f32.mrf.mxu0
    %v370 = vpop.f32.mrf.mxu0
    %v371 = vadd.f32 0.0, %v370
    %v372 = vpop.f32.mrf.mxu0
    %373 = vmatprep.mubr.bf16.mxu0 0
    %374 = vmatmul.mubr.bf16.gmra.mxu0 %v119
    %v375 = vpop.f32.mrf.mxu0
    %v376 = vadd.f32 0.0, %v375
    %v377 = vpop.f32.mrf.mxu0
    %v378 = vpop.f32.mrf.mxu0
    %v379 = vadd.f32 0.0, %v378
    %v380 = vpop.f32.mrf.mxu0
    %381 = vdwg.mxu0
    %v382 = vpack.c.bf16 %v319, %v315
    %v383 = vpack.c.bf16 %v321, %v317
    %v384 = vpack.c.bf16 %v371, %v368
    %v385 = vpack.c.bf16 %v329, %v325
    %v386 = vpack.c.bf16 %v331, %v327
    %v387 = vpack.c.bf16 %v379, %v376
    %v394 = vunpack.c.l.b16 %v382
    %v395 = vunpack.c.l.b16 %v383
    %v396 = vunpack.c.l.b16 %v384
    %v397 = vunpack.c.h.b16 %v382
    %v398 = vunpack.c.h.b16 %v383
    %v399 = vunpack.c.h.b16 %v384
    %v400 = vunpack.c.l.b16 %v385
    %v401 = vunpack.c.l.b16 %v386
    %v402 = vunpack.c.l.b16 %v387
    %v403 = vunpack.c.h.b16 %v385
    %v404 = vunpack.c.h.b16 %v386
    %v405 = vunpack.c.h.b16 %v387
    %v406 = vpack.c.b16 %v395, %v394
    %v407 = vpack.c.b16 %v396, %v396
    %v408 = vpack.c.b16 %v398, %v397
    %v409 = vpack.c.b16 %v399, %v399
    %v410 = vpack.c.b16 %v401, %v400
    %v411 = vpack.c.b16 %v402, %v402
    %v412 = vpack.c.b16 %v404, %v403
    %v413 = vpack.c.b16 %v405, %v405
    %422 = vst [vmem:[#allocation7] sm:$0xff] %v406
    %423 = vst [vmem:[#allocation7 + $0x8] sm:$0xf] %v407
    %424 = vst [vmem:[#allocation7 + $0xc] sm:$0xff] %v408
    %425 = vst [vmem:[#allocation7 + $0x14] sm:$0xf] %v409
    %426 = vst [vmem:[#allocation7 + $0x18] sm:$0xff] %v410
    %427 = vst [vmem:[#allocation7 + $0x20] sm:$0xf] %v411
    %428 = vst [vmem:[#allocation7 + $0x24] sm:$0xff] %v412
    %429 = vst [vmem:[#allocation7 + $0x2c] sm:$0xf] %v413
    // Predicated region
    $region26: #{tpu_custom_call.1} parent=1 // pred_check
      _
    $region27: #{tpu_custom_call.1} parent=1 // pred_check_branch
      %431 = sbr.rel (0) target = $region29
    $region28: #{tpu_custom_call.1} parent=1 // pred_region
      %s433 = ssub.s32 768, 768
      %434 = vsyncadd [#allocation4], %s433
      %s435 = sshll.u32 [#allocation7], 4
      %s436 = int_to_ptr.vmem [resolvable:$true] %s435
      %441 = dma.vmem_to_hbm [thread:$0]  %s436, 768, %s4, [#allocation4], 192, 192, 12
    $region29: #{tpu_custom_call.1} parent=1 // pred_fallthru
      _
    // Predicated region
    $region30: #{tpu_custom_call.1} parent=1 // pred_check
      _
    $region31: #{tpu_custom_call.1} parent=1 // pred_check_branch
      %443 = sbr.rel (0) target = $region33
    $region32: #{tpu_custom_call.1} parent=1 // pred_region
      %444 = dma.done [#allocation4], 768
    $region33: #{tpu_custom_call.1} parent=1 // pred_fallthru
      _
    %445 = vsyncpa [#allocation3], 1
    %446 = vsyncpa [#allocation6], 1
    %447 = vsyncpa [#allocation4], 1

</llo_original>
